<compile_context>
chip_gen: v7x
topology: tpu7x:2x2x1
jax: 0.10.0
libtpu: 0.0.40
codegen_flags: <defaults>
</compile_context>

<pallas_src>
import functools
import math

import jax
import jax.numpy as jnp
from jax.experimental import pallas as pl
from jax.experimental.pallas import tpu as pltpu

LEAKY_SLOPE = 0.01   # nn.LeakyReLU() default negative_slope
BN_EPS = 1e-5        # nn.BatchNorm1d default eps


def _round_up(x, m):
    return ((x + m - 1) // m) * m


def _pick_tile_n(d_out_pad):
    for tn in (512, 256, 128):
        if d_out_pad % tn == 0:
            return tn
    return 128


def _vmem_budget_bytes():
    # ~75% of physical VMEM: 48 MiB on v7x (64 MiB/TC), 96 MiB on v5e/v6e.
    try:
        phys = int(pltpu.get_tpu_info().vmem_capacity_bytes)
    except Exception:
        phys = 64 * 1024 * 1024   # conservative fallback (v7x-sized)
    return (phys * 3) // 4


def _pick_tile_m(n, d_in_pad, tn, out_itemsize, vmem_limit):
    tm = min(512, _round_up(n, 16))
    while tm > 16:
        need = (2 * tm * d_in_pad * 2          # x blocks (bf16, double-buffered)
                + 2 * d_in_pad * tn * 2        # W blocks
                + 4 * tm * tn * 4              # y_raw out blocks / work
                + 2 * tm * tn * max(4, out_itemsize))
        if need <= int(0.7 * vmem_limit):
            break
        tm = max(16, _round_up(tm // 2, 16))
    return tm


# --------------------------------------------------------------------------
# Kernels
# --------------------------------------------------------------------------

def _fused_resident_kernel(x_hbm, wt_ref, gb_ref, o_ref, x_vmem, copy_sem, *,
                           inv_n):
    # Copy the whole (padded) batch into VMEM once; it stays resident across
    # all feature tiles.  Grid axis is "arbitrary" so the program_id(0)==0
    # gate is safe (no megacore split of this axis).
    @pl.when(pl.program_id(0) == 0)
    def _():
        cp = pltpu.make_async_copy(x_hbm, x_vmem, copy_sem)
        cp.start()
        cp.wait()

    # Linear (bias folded away by training-mode BatchNorm): f32 accumulate.
    y = jnp.dot(x_vmem[...], wt_ref[...], preferred_element_type=jnp.float32)

    # One-pass BatchNorm statistics. Zero-padded batch rows add 0 to both
    # sums; inv_n = 1 / N_real keeps them out of mean/var.
    s1 = jnp.sum(y, axis=0, keepdims=True)
    s2 = jnp.sum(y * y, axis=0, keepdims=True)
    mean = s1 * inv_n
    var = jnp.maximum(s2 * inv_n - mean * mean, 0.0)
    scale = gb_ref[0:1, :] * jax.lax.rsqrt(var + BN_EPS)   # gamma * rsqrt(var+eps)
    shift = gb_ref[1:2, :] - mean * scale                  # beta - mean*scale
    z = y * scale + shift
    o_ref[...] = jnp.where(z > 0, z, LEAKY_SLOPE * z).astype(o_ref.dtype)


def _matmul_stats_kernel(x_ref, wt_ref, y_ref, stat_ref):
    # grid = (feature tiles, batch tiles); batch is the inner "arbitrary"
    # (reduction) axis.  stat block (2, tn) is resident across it.
    y = jnp.dot(x_ref[...], wt_ref[...], preferred_element_type=jnp.float32)
    y_ref[...] = y

    @pl.when(pl.program_id(1) == 0)
    def _():
        stat_ref[...] = jnp.zeros_like(stat_ref)

    stat_ref[0:1, :] += jnp.sum(y, axis=0, keepdims=True)
    stat_ref[1:2, :] += jnp.sum(y * y, axis=0, keepdims=True)


def _bn_act_kernel(y_ref, stat_ref, gb_ref, o_ref, *, inv_n):
    mean = stat_ref[0:1, :] * inv_n
    var = jnp.maximum(stat_ref[1:2, :] * inv_n - mean * mean, 0.0)
    scale = gb_ref[0:1, :] * jax.lax.rsqrt(var + BN_EPS)
    shift = gb_ref[1:2, :] - mean * scale
    z = y_ref[...] * scale + shift
    o_ref[...] = jnp.where(z > 0, z, LEAKY_SLOPE * z).astype(o_ref.dtype)


# --------------------------------------------------------------------------
# Wrappers
# --------------------------------------------------------------------------

def pack_params(weight, gamma, beta, *, tn=None):
    """One-time parameter packing (hoisted out of the per-call path).

    Pads d_in/d_out to lane multiples, transposes + bf16-casts W, and packs
    gamma/beta into one (2, D_out_pad) f32 operand.  Padded gamma columns are
    zero, so padded output features come out exactly 0 (sliced off later).
    """
    d_out, d_in = weight.shape
    d_in_pad = _round_up(d_in, 128)
    d_out_pad = _round_up(d_out, 128)
    if tn is None:
        tn = _pick_tile_n(d_out_pad)
    d_out_pad = _round_up(d_out_pad, tn)

    wt = jnp.pad(weight.astype(jnp.float32).T,
                 ((0, d_in_pad - d_in), (0, d_out_pad - d_out)))
    wt = wt.astype(jnp.bfloat16)            # MXU inputs bf16, f32 accumulate
    gb = jnp.zeros((2, d_out_pad), jnp.float32)
    gb = gb.at[0, :d_out].set(gamma.astype(jnp.float32))
    gb = gb.at[1, :d_out].set(beta.astype(jnp.float32))
    return {"wt": wt, "gb": gb, "d_in": d_in, "d_out": d_out,
            "d_in_pad": d_in_pad, "d_out_pad": d_out_pad, "tn": tn}


def encoder_relu_apply(x, packed, *, out_dtype=jnp.float32,
                       force_tiled=False, tile_m=None):
    """Fused Linear -> BatchNorm1d(train) -> LeakyReLU with pre-packed params."""
    n, d_in = x.shape
    assert d_in == packed["d_in"], "input feature dim mismatch"
    # NOTE: n == 1 gives var == 0 and output == LeakyReLU(beta); PyTorch
    # raises for batch size 1 in training mode, this kernel proceeds silently.
    d_in_pad = packed["d_in_pad"]
    d_out_pad = packed["d_out_pad"]
    d_out = packed["d_out"]
    tn = packed["tn"]
    wt_b, gb = packed["wt"], packed["gb"]

    num_feat_tiles = d_out_pad // tn
    vmem_limit = _vmem_budget_bytes()
    out_itemsize = jnp.dtype(out_dtype).itemsize
    inv_n = 1.0 / n

    # ---------------- resident (single fused kernel) path ----------------
    n_res = _round_up(n, 16)
    resident_bytes = (
        n_res * d_in_pad * 2                 # x VMEM scratch (single copy)
        + 2 * d_in_pad * tn * 2              # double-buffered W tiles
        + 2 * 2 * tn * 4                     # gamma/beta tiles
        + 2 * n_res * tn * out_itemsize      # double-buffered output tiles
        + 2 * n_res * tn * 4                 # f32 working tile slack
    )
    use_resident = (not force_tiled) and resident_bytes <= int(0.8 * vmem_limit)

    if use_resident:
        n_pad = n_res
        x_b = jnp.pad(x.astype(jnp.float32),
                      ((0, n_pad - n), (0, d_in_pad - d_in))).astype(jnp.bfloat16)
        cost = pl.CostEstimate(
            flops=2 * n_pad * d_in_pad * d_out_pad,
            transcendentals=0,
            bytes_accessed=(n_pad * d_in_pad * 2 + d_in_pad * d_out_pad * 2
                            + 2 * d_out_pad * 4
                            + n_pad * d_out_pad * out_itemsize),
        )
        out = pl.pallas_call(
            functools.partial(_fused_resident_kernel, inv_n=inv_n),
            out_shape=jax.ShapeDtypeStruct((n_pad, d_out_pad), out_dtype),
            grid=(num_feat_tiles,),
            in_specs=[
                pl.BlockSpec(memory_space=pl.ANY),              # x stays in HBM
                pl.BlockSpec((d_in_pad, tn), lambda j: (0, j)),  # W^T tile
                pl.BlockSpec((2, tn), lambda j: (0, j)),         # gamma/beta
            ],
            out_specs=pl.BlockSpec((n_pad, tn), lambda j: (0, j)),
            scratch_shapes=[
                pltpu.VMEM((n_pad, d_in_pad), jnp.bfloat16),     # resident x
                pltpu.SemaphoreType.DMA,
            ],
            compiler_params=pltpu.CompilerParams(
                dimension_semantics=("arbitrary",),  # copy-once gate needs it
                vmem_limit_bytes=vmem_limit,
            ),
            cost_estimate=cost,
        )(x_b, wt_b, gb)
        return out[:n, :d_out]

    # ---------------- batch-tiled two-stage path (v7x-safe) ----------------
    if tile_m is not None:
        tm = max(16, _round_up(int(tile_m), 16))
    else:
        tm = _pick_tile_m(n, d_in_pad, tn, out_itemsize, vmem_limit)
    n_pad = _round_up(n, tm)
    num_batch_tiles = n_pad // tm
    x_b = jnp.pad(x.astype(jnp.float32),
                  ((0, n_pad - n), (0, d_in_pad - d_in))).astype(jnp.bfloat16)

    cost1 = pl.CostEstimate(
        flops=2 * n_pad * d_in_pad * d_out_pad,
        transcendentals=0,
        bytes_accessed=(num_feat_tiles * n_pad * d_in_pad * 2
                        + d_in_pad * d_out_pad * 2
                        + n_pad * d_out_pad * 4 + 2 * d_out_pad * 4),
    )
    y_raw, stats = pl.pallas_call(
        _matmul_stats_kernel,
        out_shape=(jax.ShapeDtypeStruct((n_pad, d_out_pad), jnp.float32),
                   jax.ShapeDtypeStruct((2, d_out_pad), jnp.float32)),
        grid=(num_feat_tiles, num_batch_tiles),
        in_specs=[
            pl.BlockSpec((tm, d_in_pad), lambda j, i: (i, 0)),
            pl.BlockSpec((d_in_pad, tn), lambda j, i: (0, j)),
        ],
        out_specs=(
            pl.BlockSpec((tm, tn), lambda j, i: (i, j)),
            pl.BlockSpec((2, tn), lambda j, i: (0, j)),   # resident accumulator
        ),
        compiler_params=pltpu.CompilerParams(
            dimension_semantics=("parallel", "arbitrary"),
            vmem_limit_bytes=vmem_limit,
        ),
        cost_estimate=cost1,
    )(x_b, wt_b)

    cost2 = pl.CostEstimate(
        flops=4 * n_pad * d_out_pad,
        transcendentals=0,
        bytes_accessed=(n_pad * d_out_pad * 4 + 4 * d_out_pad * 4
                        + n_pad * d_out_pad * out_itemsize),
    )
    out = pl.pallas_call(
        functools.partial(_bn_act_kernel, inv_n=inv_n),
        out_shape=jax.ShapeDtypeStruct((n_pad, d_out_pad), out_dtype),
        grid=(num_feat_tiles, num_batch_tiles),
        in_specs=[
            pl.BlockSpec((tm, tn), lambda j, i: (i, j)),
            pl.BlockSpec((2, tn), lambda j, i: (0, j)),
            pl.BlockSpec((2, tn), lambda j, i: (0, j)),
        ],
        out_specs=pl.BlockSpec((tm, tn), lambda j, i: (i, j)),
        compiler_params=pltpu.CompilerParams(
            dimension_semantics=("parallel", "parallel"),
            vmem_limit_bytes=vmem_limit,
        ),
        cost_estimate=cost2,
    )(y_raw, stats, gb)
    return out[:n, :d_out]


def encoder_relu_forward(x, weight, bias, gamma, beta, **kwargs):
    """Convenience wrapper matching the module signature.

    `bias` is accepted for parity with nn.Linear but is mathematically
    cancelled by training-mode BatchNorm, so it never enters the kernel.
    For repeated calls, use pack_params() once + encoder_relu_apply().
    """
    del bias
    packed = pack_params(weight, gamma, beta)
    return encoder_relu_apply(x, packed, **kwargs)


def init_params(key, layer_in, layer_out):
    """Parameter init matching the PyTorch module's __init__."""
    k_w, k_b, k_g, k_be = jax.random.split(key, 4)
    a = 0.01
    gain = math.sqrt(2.0 / (1.0 + a * a))
    bound_w = gain * math.sqrt(3.0 / layer_in)
    weight = jax.random.uniform(k_w, (layer_out, layer_in), jnp.float32,
                                minval=-bound_w, maxval=bound_w)
    bound_b = 1.0 / math.sqrt(layer_in)
    bias = jax.random.uniform(k_b, (layer_out,), jnp.float32,
                              minval=-bound_b, maxval=bound_b)
    # BN affine defaults are ones/zeros; perturb for a stronger numeric check.
    gamma = 1.0 + 0.1 * jax.random.normal(k_g, (layer_out,), jnp.float32)
    beta = 0.1 * jax.random.normal(k_be, (layer_out,), jnp.float32)
    return weight, bias, gamma, beta


if __name__ == "__main__":
    key = jax.random.PRNGKey(0)
    k_x1, k_p1, k_x2, k_p2 = jax.random.split(key, 4)

    def reference(xi, wi, bi, gi, be):
        # Full module semantics: Linear(+bias) -> BN(train stats) -> LeakyReLU
        y = xi @ wi.T + bi
        m = y.mean(axis=0, keepdims=True)
        v = ((y - m) ** 2).mean(axis=0, keepdims=True)
        y = (y - m) / jnp.sqrt(v + BN_EPS) * gi + be
        return jnp.where(y > 0, y, LEAKY_SLOPE * y)

    # ---- case 1: small shapes -> resident single-kernel path ----
    batch, layer_in, layer_out = 8, 32, 16
    x = jax.random.normal(k_x1, (batch, layer_in), jnp.float32)
    weight, bias, gamma, beta = init_params(k_p1, layer_in, layer_out)
    packed = pack_params(weight, gamma, beta)           # one-time packing
    out = encoder_relu_apply(x, packed)
    jax.block_until_ready(out)
    assert out.shape == (batch, layer_out)
    xb = x.astype(jnp.bfloat16).astype(jnp.float32)
    wb = weight.astype(jnp.bfloat16).astype(jnp.float32)
    assert jnp.allclose(out, reference(xb, wb, bias, gamma, beta),
                        atol=2e-3, rtol=2e-3), "resident path: bf16-ref mismatch"
    assert jnp.allclose(out, reference(x, weight, bias, gamma, beta),
                        atol=5e-2, rtol=5e-2), "resident path: f32-ref mismatch"

    # ---- case 2: force the batch-tiled two-stage path (v7x-style) ----
    batch2, layer_in2, layer_out2 = 64, 48, 300
    x2 = jax.random.normal(k_x2, (batch2, layer_in2), jnp.float32)
    weight2, bias2, gamma2, beta2 = init_params(k_p2, layer_in2, layer_out2)
    packed2 = pack_params(weight2, gamma2, beta2)
    out2 = encoder_relu_apply(x2, packed2, force_tiled=True, tile_m=16)
    jax.block_until_ready(out2)
    assert out2.shape == (batch2, layer_out2)
    xb2 = x2.astype(jnp.bfloat16).astype(jnp.float32)
    wb2 = weight2.astype(jnp.bfloat16).astype(jnp.float32)
    assert jnp.allclose(out2, reference(xb2, wb2, bias2, gamma2, beta2),
                        atol=2e-3, rtol=2e-3), "tiled path: bf16-ref mismatch"
    assert jnp.allclose(out2, reference(x2, weight2, bias2, gamma2, beta2),
                        atol=5e-2, rtol=5e-2), "tiled path: f32-ref mismatch"

    print("KERNEL_OK")
</pallas_src>

<mosaic_0001>
module attributes {stable_mosaic.version = 11 : i64} {
  func.func @_fused_resident_kernel(%arg0: i32, %arg1: memref<16x128xbf16, #tpu.memory_space<any>>, %arg2: memref<128x128xbf16, #tpu.memory_space<vmem>>, %arg3: memref<2x128xf32, #tpu.memory_space<vmem>>, %arg4: memref<16x128xf32, #tpu.memory_space<vmem>>, %arg5: memref<16x128xbf16, #tpu.memory_space<vmem>>, %arg6: memref<!tpu.dma_semaphore, #tpu.memory_space<semaphore_mem>>) attributes {dimension_semantics = [#tpu.dimension_semantics<arbitrary>], iteration_bounds = array<i64: 1>, scalar_prefetch = 0 : i64, scratch_operands = 2 : i64, tpu.core_type = #tpu.core_type<tc>, window_params = [{}, {transform_indices = @transform_1, window_bounds = array<i64: 128, 128>}, {transform_indices = @transform_2, window_bounds = array<i64: 2, 128>}, {transform_indices = @transform_3, window_bounds = array<i64: 16, 128>}]} {
    %c0_i32 = arith.constant 0 : i32
    %0 = arith.cmpi eq, %arg0, %c0_i32 : i32
    %1 = arith.extui %0 : i1 to i32
    %c0_i32_0 = arith.constant 0 : i32
    %2 = arith.cmpi ne, %1, %c0_i32_0 : i32
    scf.if %2 {
      tpu.enqueue_dma source(%arg1 : memref<16x128xbf16, #tpu.memory_space<any>>) target(%arg5 : memref<16x128xbf16, #tpu.memory_space<vmem>>) target_semaphore(%arg6 : memref<!tpu.dma_semaphore, #tpu.memory_space<semaphore_mem>>)
      tpu.wait_dma2 semaphore(%arg6 : memref<!tpu.dma_semaphore, #tpu.memory_space<semaphore_mem>>) src(%arg1 : memref<16x128xbf16, #tpu.memory_space<any>>) dst(%arg5 : memref<16x128xbf16, #tpu.memory_space<vmem>>)
    } else {
    }
    %c0 = arith.constant 0 : index
    %c0_1 = arith.constant 0 : index
    %3 = vector.load %arg5[%c0, %c0_1] : memref<16x128xbf16, #tpu.memory_space<vmem>>, vector<16x128xbf16>
    %c0_2 = arith.constant 0 : index
    %c0_3 = arith.constant 0 : index
    %4 = vector.load %arg2[%c0_2, %c0_3] : memref<128x128xbf16, #tpu.memory_space<vmem>>, vector<128x128xbf16>
    %cst = arith.constant dense<0.000000e+00> : vector<16x128xf32>
    %5 = tpu.matmul %3, %4, %cst {dimension_numbers = #tpu.dot_dimension_numbers<[1], [0], [0], [1], [0, 0, 1, 1], [], []>} : vector<16x128xbf16>, vector<128x128xbf16>, vector<16x128xf32> -> vector<16x128xf32>
    %cst_4 = arith.constant dense<0.000000e+00> : vector<128xf32>
    %6 = vector.multi_reduction <add>, %5, %cst_4 [0] : vector<16x128xf32> to vector<128xf32>
    %7 = vector.shape_cast %6 : vector<128xf32> to vector<1x128xf32>
    %8 = arith.mulf %5, %5 : vector<16x128xf32>
    %cst_5 = arith.constant dense<0.000000e+00> : vector<128xf32>
    %9 = vector.multi_reduction <add>, %8, %cst_5 [0] : vector<16x128xf32> to vector<128xf32>
    %10 = vector.shape_cast %9 : vector<128xf32> to vector<1x128xf32>
    %cst_6 = arith.constant 1.250000e-01 : f32
    %11 = vector.broadcast %cst_6 : f32 to vector<1x128xf32>
    %12 = arith.mulf %7, %11 : vector<1x128xf32>
    %cst_7 = arith.constant 1.250000e-01 : f32
    %13 = vector.broadcast %cst_7 : f32 to vector<1x128xf32>
    %14 = arith.mulf %10, %13 : vector<1x128xf32>
    %15 = arith.mulf %12, %12 : vector<1x128xf32>
    %16 = arith.subf %14, %15 : vector<1x128xf32>
    %cst_8 = arith.constant 0.000000e+00 : f32
    %17 = vector.broadcast %cst_8 : f32 to vector<1x128xf32>
    %18 = arith.maximumf %16, %17 : vector<1x128xf32>
    %c0_9 = arith.constant 0 : index
    %c0_10 = arith.constant 0 : index
    %19 = vector.load %arg3[%c0_9, %c0_10] : memref<2x128xf32, #tpu.memory_space<vmem>>, vector<1x128xf32>
    %cst_11 = arith.constant 9.99999974E-6 : f32
    %20 = vector.broadcast %cst_11 : f32 to vector<1x128xf32>
    %21 = arith.addf %18, %20 : vector<1x128xf32>
    %22 = math.rsqrt %21 : vector<1x128xf32>
    %23 = arith.mulf %19, %22 : vector<1x128xf32>
    %c1 = arith.constant 1 : index
    %c0_12 = arith.constant 0 : index
    %24 = vector.load %arg3[%c1, %c0_12] : memref<2x128xf32, #tpu.memory_space<vmem>>, vector<1x128xf32>
    %25 = arith.mulf %12, %23 : vector<1x128xf32>
    %26 = arith.subf %24, %25 : vector<1x128xf32>
    %27 = vector.broadcast %23 : vector<1x128xf32> to vector<16x128xf32>
    %28 = arith.mulf %5, %27 : vector<16x128xf32>
    %29 = vector.broadcast %26 : vector<1x128xf32> to vector<16x128xf32>
    %30 = arith.addf %28, %29 : vector<16x128xf32>
    %cst_13 = arith.constant 0.000000e+00 : f32
    %31 = vector.broadcast %cst_13 : f32 to vector<16x128xf32>
    %32 = arith.cmpf ogt, %30, %31 : vector<16x128xf32>
    %cst_14 = arith.constant 0.00999999977 : f32
    %33 = vector.broadcast %cst_14 : f32 to vector<16x128xf32>
    %34 = arith.mulf %33, %30 : vector<16x128xf32>
    %35 = arith.select %32, %30, %34 : vector<16x128xi1>, vector<16x128xf32>
    %c0_15 = arith.constant 0 : index
    %c0_16 = arith.constant 0 : index
    %36 = vector.load %arg4[%c0_15, %c0_16] : memref<16x128xf32, #tpu.memory_space<vmem>>, vector<16x128xf32>
    tpu.vector_store %arg4[%c0_15, %c0_16], %35 {strides = array<i32>} : memref<16x128xf32, #tpu.memory_space<vmem>>, vector<16x128xf32>,
    return
  }
  func.func @transform_1(%arg0: i32) -> (i32, i32) {
    %c0_i32 = arith.constant 0 : i32
    %c0_i32_0 = arith.constant 0 : i32
    return %c0_i32, %arg0 : i32, i32
  }
  func.func @transform_2(%arg0: i32) -> (i32, i32) {
    %c0_i32 = arith.constant 0 : i32
    %c0_i32_0 = arith.constant 0 : i32
    return %c0_i32, %arg0 : i32, i32
  }
  func.func @transform_3(%arg0: i32) -> (i32, i32) {
    %c0_i32 = arith.constant 0 : i32
    %c0_i32_0 = arith.constant 0 : i32
    return %c0_i32, %arg0 : i32, i32
  }
}

</mosaic_0001>

<llo_original>
// kernel: tpu_custom_call.1
$region0: #{tpu_custom_call.1}
  #allocation0 [shape = 'u32[]', space=smem, size = 0x4, offset = 0x4, fixed_abs, tag = 'smem constant byte address 0x4 - core index']
  #allocation1 [shape = 'u32[144,128]{1,0:T(1,128)}', space=vmem, size = 0x12000, scoped, tag = 'internal scratch']
  #allocation2 [shape = 'bf16[16,128]{1,0:T(16,128)(2,1)}', space=vmem, size = 0x1000, scoped, tag = 'scratch operand']
  #allocation3 [shape = 's32[1]{0}', space=sflag, size = 0x4, scoped, tag = 'scratch operand']
  #allocation8 [shape = 's32[]', space=sflag, size = 0x4, offset = 0, fixed_abs, tag = 'sflag constant byte address 0x0 - dummy sync flag']
  #allocation9 [shape = 's32[]', space=sflag, size = 0x4, offset = 0, fixed_abs, tag = 'sflag constant byte address 0x0 - dummy sync flag']
  #allocation10 [shape = 'u32[]', space=smem, size = 0x4, offset = 0x44, fixed_abs, tag = 'smem constant byte address 0x44 - assertion arg 0']
  #allocation11 [shape = 'u32[]', space=smem, size = 0x4, offset = 0x48, fixed_abs, tag = 'smem constant byte address 0x48 - assertion arg 1']
  %s0 = inlined_call_operand.hbm [shape: bf16[16,128], index: 0, kind: input, shape index: {}]
  %s1 = inlined_call_operand.hbm [shape: bf16[128,128], index: 1, kind: input, shape index: {}]
  %s2 = inlined_call_operand.vmem [shape: f32[2,128], index: 2, kind: input, shape index: {}]
  %s3 = inlined_call_operand.hbm [shape: f32[16,128], index: 3, kind: output, shape index: {}]
  %s4 = sld [smem:[#allocation0]]
  $region30: #{tpu_custom_call.1} parent=0
    _
  %s6 = ssub.s32 1, %s4
  %s7 = scalar_select 0, %s6, %s4
  $region1: #{tpu_custom_call.1} parent=0
    #allocation4 [shape = 'u8[32768]{0}', space=vmem, size = 0x8000, scoped, tag = 'input window, operand 1, single buffered']
    #allocation5 [shape = 's32[1]{0}', space=sflag, size = 0x4, scoped, tag = 'scoped memory for tpu_custom_call.1']
    #allocation6 [shape = 's32[1]{0}', space=sflag, size = 0x4, scoped, tag = 'scoped memory for tpu_custom_call.1']
    #allocation7 [shape = 'u8[8192]{0}', space=vmem, size = 0x2000, scoped, tag = 'output window, operand 0, single buffered']
    %8 = vsyncpa [#allocation5], 0
    %9 = vsyncpa [#allocation6], 0
    // Predicated region
    $region2: #{tpu_custom_call.1} parent=1 // pred_check
      _
    $region3: #{tpu_custom_call.1} parent=1 // pred_check_branch
      %11 = sbr.rel (0) target = $region5
    $region4: #{tpu_custom_call.1} parent=1 // pred_region
      %s13 = ssub.s32 1024, 1024
      %14 = vsyncadd [#allocation5], %s13
      %s15 = sshll.u32 [#allocation4], 4
      %s16 = int_to_ptr.vmem [resolvable:$true] %s15
      %21 = dma.hbm_to_vmem [thread:$0]  %s1, 1024, %s16, [#allocation5], 64, 64, 4
    $region5: #{tpu_custom_call.1} parent=1 // pred_fallthru
      _
    // Predicated region
    $region6: #{tpu_custom_call.1} parent=1 // pred_check
      _
    $region7: #{tpu_custom_call.1} parent=1 // pred_check_branch
      %23 = sbr.rel (0) target = $region9
    $region8: #{tpu_custom_call.1} parent=1 // pred_region
      _
    $region9: #{tpu_custom_call.1} parent=1 // pred_fallthru
      _
    // Predicated region
    $region10: #{tpu_custom_call.1} parent=1 // pred_check
      _
    $region11: #{tpu_custom_call.1} parent=1 // pred_check_branch
      %25 = sbr.rel (0) target = $region13
    $region12: #{tpu_custom_call.1} parent=1 // pred_region
      %26 = dma.done [#allocation5], 1024
    $region13: #{tpu_custom_call.1} parent=1 // pred_fallthru
      _
    %p28 = scmp.eq.s32.totalorder 0, 0
    // Predicated region
    $region14: #{tpu_custom_call.1} parent=1 // pred_check
      %p29 = pneg %p28
    $region15: #{tpu_custom_call.1} parent=1 // pred_check_branch
      %31 = sbr.rel (%p29) target = $region17
    $region16: #{tpu_custom_call.1} parent=1 // pred_region
      // Predicated region
      $region18: #{tpu_custom_call.1} parent=16 // pred_check
        _
      $region19: #{tpu_custom_call.1} parent=16 // pred_check_branch
        %33 = sbr.rel target = $region21
      $region20: #{tpu_custom_call.1} parent=16 // pred_region
        %34 = sst [smem:[#allocation10]] [#allocation9]
        %35 = sst [smem:[#allocation11]] [#allocation8]
      $region21: #{tpu_custom_call.1} parent=16 // pred_fallthru
        _
      %37 = shalt.err (0)
      %s39 = sshll.u32 [#allocation2], 4
      %s40 = int_to_ptr.vmem [resolvable:$true] %s39
      %42 = dma.hbm_to_vmem [thread:$0]  %s0, 128, %s40, [#allocation3]
      %s43 = smul.u32 4, 2
      %s44 = smul.u32 %s43, 1
      %s45 = sshll.u32 %s44, 4
      %46 = dma.done [#allocation3], %s45
    $region17: #{tpu_custom_call.1} parent=1 // pred_fallthru
      _
    %v47 = vld [vmem:[#allocation2] sm:$0xff]
    %v48 = vld [vmem:[#allocation4] sm:$0xf]
    %v49 = vld [vmem:[#allocation4 + $0x4] sm:$0xf]
    %v50 = vld [vmem:[#allocation4 + $0x8] sm:$0xf]
    %v51 = vld [vmem:[#allocation4 + $0xc] sm:$0xf]
    %v52 = vld [vmem:[#allocation4 + $0x10] sm:$0xf]
    %v53 = vld [vmem:[#allocation4 + $0x14] sm:$0xf]
    %v54 = vld [vmem:[#allocation4 + $0x18] sm:$0xf]
    %v55 = vld [vmem:[#allocation4 + $0x1c] sm:$0xf]
    %v56 = vld [vmem:[#allocation4 + $0x20] sm:$0xf]
    %v57 = vld [vmem:[#allocation4 + $0x24] sm:$0xf]
    %v58 = vld [vmem:[#allocation4 + $0x28] sm:$0xf]
    %v59 = vld [vmem:[#allocation4 + $0x2c] sm:$0xf]
    %v60 = vld [vmem:[#allocation4 + $0x30] sm:$0xf]
    %v61 = vld [vmem:[#allocation4 + $0x34] sm:$0xf]
    %v62 = vld [vmem:[#allocation4 + $0x38] sm:$0xf]
    %v63 = vld [vmem:[#allocation4 + $0x3c] sm:$0xf]
    %v80 = vunpack.c.l.b16 %v48
    %v81 = vunpack.c.l.b16 %v49
    %v82 = vunpack.c.l.b16 %v50
    %v83 = vunpack.c.l.b16 %v51
    %v84 = vunpack.c.l.b16 %v52
    %v85 = vunpack.c.l.b16 %v53
    %v86 = vunpack.c.l.b16 %v54
    %v87 = vunpack.c.l.b16 %v55
    %v88 = vunpack.c.l.b16 %v56
    %v89 = vunpack.c.l.b16 %v57
    %v90 = vunpack.c.l.b16 %v58
    %v91 = vunpack.c.l.b16 %v59
    %v92 = vunpack.c.l.b16 %v60
    %v93 = vunpack.c.l.b16 %v61
    %v94 = vunpack.c.l.b16 %v62
    %v95 = vunpack.c.l.b16 %v63
    %v96 = vpack.c.b16 %v81, %v80
    %v97 = vpack.c.b16 %v83, %v82
    %v98 = vpack.c.b16 %v85, %v84
    %v99 = vpack.c.b16 %v87, %v86
    %v100 = vpack.c.b16 %v89, %v88
    %v101 = vpack.c.b16 %v91, %v90
    %v102 = vpack.c.b16 %v93, %v92
    %v103 = vpack.c.b16 %v95, %v94
    %112 = vmatprep.subr.bf16.mxu0 0
    %113 = vmatpush1.bf16.msra.mxu0 %v96
    %114 = vmatprep.subr.bf16.mxu0 0
    %115 = vmatpush1.bf16.msra.mxu0 %v97
    %116 = vmatprep.subr.bf16.mxu0 0
    %117 = vmatpush1.bf16.msra.mxu0 %v98
    %118 = vmatprep.subr.bf16.mxu0 0
    %119 = vmatpush1.bf16.msra.mxu0 %v99
    %120 = vmatprep.subr.bf16.mxu0 0
    %121 = vmatpush1.bf16.msra.mxu0 %v100
    %122 = vmatprep.subr.bf16.mxu0 0
    %123 = vmatpush1.bf16.msra.mxu0 %v101
    %124 = vmatprep.subr.bf16.mxu0 0
    %125 = vmatpush1.bf16.msra.mxu0 %v102
    %126 = vmatprep.subr.bf16.mxu0 0
    %127 = vmatpush1.bf16.msra.mxu0 %v103
    %128 = vmatprep.subr.bf16.mxu0 0
    %129 = vmatpush1.bf16.msra.mxu0 0
    %130 = vmatprep.subr.bf16.mxu0 0
    %131 = vmatpush1.bf16.msra.mxu0 0
    %132 = vmatprep.subr.bf16.mxu0 0
    %133 = vmatpush1.bf16.msra.mxu0 0
    %134 = vmatprep.subr.bf16.mxu0 0
    %135 = vmatpush1.bf16.msra.mxu0 0
    %136 = vmatprep.subr.bf16.mxu0 0
    %137 = vmatpush1.bf16.msra.mxu0 0
    %138 = vmatprep.subr.bf16.mxu0 0
    %139 = vmatpush1.bf16.msra.mxu0 0
    %140 = vmatprep.subr.bf16.mxu0 0
    %141 = vmatpush1.bf16.msra.mxu0 0
    %142 = vmatprep.subr.bf16.mxu0 0
    %143 = vmatpush1.bf16.msra.mxu0 0
    %144 = vmatprep.mubr.bf16.mxu0 0
    %145 = vmatmul.mubr.bf16.gmra.mrb[0].mxu0 %v47
    %v146 = vpop.f32.mrb[0].mxu0
    %v147 = vadd.f32 0.0, %v146
    %v148 = vpop.f32.mrb[0].mxu0
    %v149 = vpop.f32.mrb[0].mxu0
    %v150 = vadd.f32 0.0, %v149
    %v151 = vpop.f32.mrb[0].mxu0
    %152 = vdwg.mxu0
    %v153 = vadd.f32 %v147, %v150
    %v154 = vrot.slane %v153, 4
    %v155 = vadd.f32 %v153, %v154
    %v156 = vrot.slane %v155, 2
    %v157 = vadd.f32 %v155, %v156
    %v158 = vrot.slane %v157, 1
    %v159 = vadd.f32 %v157, %v158
    %v160 = vmul.f32 %v147, %v147
    %v161 = vmul.f32 %v150, %v150
    %v162 = vadd.f32 %v160, %v161
    %v163 = vrot.slane %v162, 4
    %v164 = vadd.f32 %v162, %v163
    %v165 = vrot.slane %v164, 2
    %v166 = vadd.f32 %v164, %v165
    %v167 = vrot.slane %v166, 1
    %v168 = vadd.f32 %v166, %v167
    %v169 = vmul.f32 %v159, 0.125
    %v170 = vmul.f32 %v168, 0.125
    %v171 = vmul.f32 %v169, %v169
    %v172 = vsub.f32 %v170, %v171
    %v173 = vmax.f32 %v172, 0.0
    %v174 = vld [vmem:[%s2] sm:$0x1]
    %v175 = vadd.f32 %v173, 1e-05
    %v176 = vrsqrt.pop %v175
    %v177 = vmul.f32 %v174, %v176
    %v178 = vld [vmem:[%s2 + $0x1] sm:$0x1]
    %v179 = vmul.f32 %v169, %v177
    %v180 = vsub.f32 %v178, %v179
    %v181 = vlaneseq
    %v182 = vshrl.u32 %v181, 7
    %v183 = vsub.s32 0, %v182
    %v184 = vrot.slane %v177, %v183
    %v185 = vmul.f32 %v147, %v184
    %v186 = vmul.f32 %v150, %v184
    %v187 = vlaneseq
    %v188 = vshrl.u32 %v187, 7
    %v189 = vsub.s32 0, %v188
    %v190 = vrot.slane %v180, %v189
    %v191 = vadd.f32 %v185, %v190
    %v192 = vadd.f32 %v186, %v190
    %vm193 = vcmp.gt.f32.partialorder %v191, 0.0
    %vm194 = vcmp.gt.f32.partialorder %v192, 0.0
    %v195 = vmul.f32 %v191, 0.01
    %v196 = vmul.f32 %v192, 0.01
    %v197 = vsel %vm193, %v191, %v195
    %v198 = vsel %vm194, %v192, %v196
    %199 = vst [vmem:[#allocation7] sm:$0xff] %v197
    %200 = vst [vmem:[#allocation7 + $0x8] sm:$0xff] %v198
    // Predicated region
    $region22: #{tpu_custom_call.1} parent=1 // pred_check
      _
    $region23: #{tpu_custom_call.1} parent=1 // pred_check_branch
      %202 = sbr.rel (0) target = $region25
    $region24: #{tpu_custom_call.1} parent=1 // pred_region
      %s204 = ssub.s32 256, 256
      %205 = vsyncadd [#allocation6], %s204
      %s206 = sshll.u32 [#allocation7], 4
      %s207 = int_to_ptr.vmem [resolvable:$true] %s206
      %212 = dma.vmem_to_hbm [thread:$0]  %s207, 256, %s3, [#allocation6], 128, 128, 8
    $region25: #{tpu_custom_call.1} parent=1 // pred_fallthru
      _
    // Predicated region
    $region26: #{tpu_custom_call.1} parent=1 // pred_check
      _
    $region27: #{tpu_custom_call.1} parent=1 // pred_check_branch
      %214 = sbr.rel (0) target = $region29
    $region28: #{tpu_custom_call.1} parent=1 // pred_region
      %215 = dma.done [#allocation6], 256
    $region29: #{tpu_custom_call.1} parent=1 // pred_fallthru
      _
    %216 = vsyncpa [#allocation5], 1
    %217 = vsyncpa [#allocation6], 1
  %218 = vsyncmov [#allocation3]
  %s219 = vpop.sfrf %218
  %p220 = scmp.eq.s32.totalorder %s219, 0
  %p221 = pneg %p220
  %223 = shalt.err (%p221)

</llo_original>
